<compile_context>
chip_gen: v7x
topology: tpu7x:2x2x1
jax: 0.10.0
libtpu: 0.0.40
codegen_flags: <defaults>
</compile_context>

<pallas_src>
import functools

import jax
import jax.numpy as jnp
from jax.experimental import pallas as pl
from jax.experimental.pallas import tpu as pltpu

_LANE = 128
_SUBLANE = 8


def _chip_config():
    """Returns (num_tensorcores, target bytes per input block)."""
    try:
        kind = jax.devices()[0].device_kind.lower()
    except Exception:
        kind = ""
    if "v7" in kind or "7x" in kind:
        # v7x: 2 TensorCores, each with its own ~3.2 TB/s HBM path. 4 MiB per
        # input block -> 2 inputs x 2 pipeline buffers = 16 MiB VMEM, well
        # under the 32 MiB scoped default, and >1 us of DMA per step so the
        # fixed per-step overhead is <15%.
        return 2, 4 * 1024 * 1024
    # v5e / v6e: single TensorCore. 2 MiB per input block -> 8 MiB total
    # double-buffered, under v5e's 16 MiB scoped-VMEM default; ~1.5-2.5 us of
    # DMA per step buries the ~0.35 us step overhead.
    return 1, 2 * 1024 * 1024


def _reg_loss_kernel(o_ref, t_ref, out_ref, *, beta, tile_rows, blocks_per_core,
                     last_block, rows_in_last, guard_dup):
    i = pl.program_id(1)

    @pl.when(i == 0)
    def _():
        out_ref[...] = jnp.zeros_like(out_ref)

    d = o_ref[...].astype(jnp.float32) - t_ref[...].astype(jnp.float32)
    ad = jnp.abs(d)
    half_inv_beta = 0.5 / beta      # folded at trace time -> multiply, no divide
    half_beta = 0.5 * beta
    loss = jnp.where(ad < beta, d * d * half_inv_beta, ad - half_beta)

    def accumulate(x):
        # Fold the (tile_rows, 128) tile into the resident (8, 128) output
        # block with plain vreg adds. The reshape splits exactly on the
        # 8-sublane boundary so it is layout-free; if a bundle dump ever shows
        # a VMEM temp here, switch to a fori_loop over 8-row strips.
        out_ref[...] += x.reshape(tile_rows // _SUBLANE, _SUBLANE, _LANE).sum(axis=0)

    needs_tail_mask = rows_in_last != tile_rows  # Python bool (trace-time)

    if not needs_tail_mask and not guard_dup:
        # Fast path: every step is a full, valid block -> no branch, no iota.
        accumulate(loss)
    else:
        blk = pl.program_id(0) * blocks_per_core + i
        if needs_tail_mask:
            @pl.when(blk < last_block)
            def _():
                accumulate(loss)

            @pl.when(blk == last_block)
            def _():
                # Only the single ragged final block pays for the iota + select
                # (its un-DMA'd rows hold stale VMEM and must be zeroed).
                row = jax.lax.broadcasted_iota(jnp.int32, (tile_rows, _LANE), 0)
                accumulate(jnp.where(row < rows_in_last, loss, 0.0))
        else:
            # Only clamped duplicate steps of the core split need guarding.
            @pl.when(blk <= last_block)
            def _():
                accumulate(loss)


def reg_loss(outputs, targets, beta=0.1):
    """Pallas implementation of REGLoss forward. Returns a scalar f32."""
    assert outputs.shape == targets.shape
    assert beta > 0.0  # beta == 0 degenerates to pure L1 (would divide by zero)
    n = int(outputs.size)

    # Flatten (free for contiguous arrays). Inputs stay in their native dtype;
    # the kernel upcasts per-tile, so no extra HBM pass for casts.
    o_flat = outputs.reshape(-1)
    t_flat = targets.reshape(-1)
    itemsize = int(jnp.dtype(o_flat.dtype).itemsize)
    sublane_align = max(_SUBLANE, 32 // itemsize)   # f32: 8, bf16: 16, int8/fp8: 32

    if n % _LANE != 0 or n < sublane_align * _LANE:
        # Lane-ragged or tiny inputs: a single fused XLA pass (one read of each
        # input) beats pad+kernel, which would cost an extra full HBM read+write.
        # TODO(synk): a manual-DMA 1-D Pallas variant could cover this case too.
        d = o_flat.astype(jnp.float32) - t_flat.astype(jnp.float32)
        ad = jnp.abs(d)
        loss = jnp.where(ad < beta, d * d * (0.5 / beta), ad - 0.5 * beta)
        return jnp.mean(loss).astype(jnp.float32)

    rows = n // _LANE
    num_cores, target_block_bytes = _chip_config()

    # Size the block by bytes so every dtype moves the same bytes per grid step.
    tile_rows = target_block_bytes // (_LANE * itemsize)
    tile_rows = min(tile_rows, (rows // sublane_align) * sublane_align)
    tile_rows = max(tile_rows, sublane_align)

    total_blocks = pl.cdiv(rows, tile_rows)
    blocks_per_core = pl.cdiv(total_blocks, num_cores)
    last_block = total_blocks - 1
    rows_in_last = rows - last_block * tile_rows
    guard_dup = num_cores * blocks_per_core != total_blocks

    o2 = o_flat.reshape(rows, _LANE)   # free reshape for contiguous data
    t2 = t_flat.reshape(rows, _LANE)

    kernel = functools.partial(
        _reg_loss_kernel,
        beta=float(beta),
        tile_rows=tile_rows,
        blocks_per_core=blocks_per_core,
        last_block=last_block,
        rows_in_last=rows_in_last,
        guard_dup=guard_dup,
    )

    if guard_dup:
        # Clamp duplicated trailing steps of the core split so they never DMA
        # out of bounds; their contribution is skipped in-kernel.
        def in_map(c, i):
            return (jnp.minimum(c * blocks_per_core + i, last_block), 0)
    else:
        def in_map(c, i):
            return (c * blocks_per_core + i, 0)

    if num_cores > 1:
        # v7x: shard the reduction across both TensorCores; each core owns its
        # own (c, 8, 128) partial-sum block, so there is no cross-core write.
        core_sem = pltpu.CORE_PARALLEL
    else:
        core_sem = pltpu.ARBITRARY   # unit axis on single-TC v5e/v6e

    partials = pl.pallas_call(
        kernel,
        out_shape=jax.ShapeDtypeStruct((num_cores, _SUBLANE, _LANE), jnp.float32),
        grid_spec=pltpu.PrefetchScalarGridSpec(
            num_scalar_prefetch=0,
            grid=(num_cores, blocks_per_core),
            in_specs=[
                pl.BlockSpec((tile_rows, _LANE), in_map),
                pl.BlockSpec((tile_rows, _LANE), in_map),
            ],
            out_specs=pl.BlockSpec((None, _SUBLANE, _LANE), lambda c, i: (c, 0, 0)),
        ),
        compiler_params=pltpu.CompilerParams(
            dimension_semantics=(core_sem, pltpu.ARBITRARY),
        ),
        cost_estimate=pl.CostEstimate(
            flops=8 * n,
            transcendentals=0,
            bytes_accessed=2 * n * itemsize + num_cores * _SUBLANE * _LANE * 4,
        ),
    )(o2, t2)

    # Single tiny cross-lane reduce over the (num_cores, 8, 128) partials.
    return (jnp.sum(partials) / n).astype(jnp.float32)


def _reference(outputs, targets, beta=0.1):
    d = outputs.astype(jnp.float32) - targets.astype(jnp.float32)
    ad = jnp.abs(d)
    loss = jnp.where(ad < beta, 0.5 * d * d / beta, ad - 0.5 * beta)
    return jnp.mean(loss)


if __name__ == "__main__":
    key = jax.random.PRNGKey(0)
    k1, k2 = jax.random.split(key)

    # Primary check: small regression-style NCHW feature maps (aligned path).
    x_shape = (2, 4, 16, 16)
    outputs = jax.random.normal(k1, x_shape, dtype=jnp.float32)
    targets = jax.random.normal(k2, x_shape, dtype=jnp.float32)
    loss = reg_loss(outputs, targets, beta=0.1)
    jax.block_until_ready(loss)
    ref = _reference(outputs, targets, beta=0.1)
    assert jnp.allclose(loss, ref, rtol=1e-5, atol=1e-6), (loss, ref)

    # Secondary check: ragged row count (exercises the pl.when-gated tail mask).
    k3, k4 = jax.random.split(k1)
    o_r = jax.random.normal(k3, (20, 128), dtype=jnp.float32)
    t_r = jax.random.normal(k4, (20, 128), dtype=jnp.float32)
    loss_r = reg_loss(o_r, t_r, beta=0.1)
    jax.block_until_ready(loss_r)
    assert jnp.allclose(loss_r, _reference(o_r, t_r, 0.1), rtol=1e-5, atol=1e-6)

    # Tertiary check: lane-ragged size (takes the fused non-Pallas fallback).
    k5, k6 = jax.random.split(k2)
    o_t = jax.random.normal(k5, (3, 50), dtype=jnp.float32)
    t_t = jax.random.normal(k6, (3, 50), dtype=jnp.float32)
    loss_t = reg_loss(o_t, t_t, beta=0.1)
    jax.block_until_ready(loss_t)
    assert jnp.allclose(loss_t, _reference(o_t, t_t, 0.1), rtol=1e-5, atol=1e-6)

    print("KERNEL_OK")
</pallas_src>

<mosaic_0001>
module attributes {stable_mosaic.version = 11 : i64} {
  func.func @_reg_loss_kernel(%arg0: i32, %arg1: i32, %arg2: memref<16x128xf32, #tpu.memory_space<vmem>>, %arg3: memref<16x128xf32, #tpu.memory_space<vmem>>, %arg4: memref<1x8x128xf32, #tpu.memory_space<vmem>>) attributes {dimension_semantics = [#tpu.dimension_semantics<arbitrary>, #tpu.dimension_semantics<arbitrary>], iteration_bounds = array<i64: 1, 1>, scalar_prefetch = 0 : i64, scratch_operands = 0 : i64, tpu.core_type = #tpu.core_type<tc>, window_params = [{transform_indices = @transform_0, window_bounds = array<i64: 16, 128>}, {transform_indices = @transform_1, window_bounds = array<i64: 16, 128>}, {transform_indices = @transform_2, window_bounds = array<i64: 1, 8, 128>}]} {
    %c0_i32 = arith.constant 0 : i32
    %0 = arith.cmpi eq, %arg1, %c0_i32 : i32
    %1 = arith.extui %0 : i1 to i32
    %c0_i32_0 = arith.constant 0 : i32
    %2 = arith.cmpi ne, %1, %c0_i32_0 : i32
    scf.if %2 {
      %cst_13 = arith.constant 0.000000e+00 : f32
      %23 = vector.broadcast %cst_13 : f32 to vector<8x128xf32>
      %c0_14 = arith.constant 0 : index
      %c0_15 = arith.constant 0 : index
      %c0_16 = arith.constant 0 : index
      %24 = vector.load %arg4[%c0_14, %c0_15, %c0_16] : memref<1x8x128xf32, #tpu.memory_space<vmem>>, vector<1x8x128xf32>
      %25 = vector.shape_cast %24 : vector<1x8x128xf32> to vector<8x128xf32>
      %26 = vector.shape_cast %23 : vector<8x128xf32> to vector<1x8x128xf32>
      tpu.vector_store %arg4[%c0_14, %c0_15, %c0_16], %26 {strides = array<i32>} : memref<1x8x128xf32, #tpu.memory_space<vmem>>, vector<1x8x128xf32>,
    } else {
    }
    %c0 = arith.constant 0 : index
    %c0_1 = arith.constant 0 : index
    %3 = vector.load %arg2[%c0, %c0_1] : memref<16x128xf32, #tpu.memory_space<vmem>>, vector<16x128xf32>
    %c0_2 = arith.constant 0 : index
    %c0_3 = arith.constant 0 : index
    %4 = vector.load %arg3[%c0_2, %c0_3] : memref<16x128xf32, #tpu.memory_space<vmem>>, vector<16x128xf32>
    %5 = arith.subf %3, %4 : vector<16x128xf32>
    %6 = math.absf %5 : vector<16x128xf32>
    %cst = arith.constant 1.000000e-01 : f32
    %7 = vector.broadcast %cst : f32 to vector<16x128xf32>
    %8 = arith.cmpf olt, %6, %7 : vector<16x128xf32>
    %9 = arith.mulf %5, %5 : vector<16x128xf32>
    %cst_4 = arith.constant 5.000000e+00 : f32
    %10 = vector.broadcast %cst_4 : f32 to vector<16x128xf32>
    %11 = arith.mulf %9, %10 : vector<16x128xf32>
    %cst_5 = arith.constant 5.000000e-02 : f32
    %12 = vector.broadcast %cst_5 : f32 to vector<16x128xf32>
    %13 = arith.subf %6, %12 : vector<16x128xf32>
    %14 = arith.select %8, %11, %13 : vector<16x128xi1>, vector<16x128xf32>
    %c0_6 = arith.constant 0 : index
    %c0_7 = arith.constant 0 : index
    %c0_8 = arith.constant 0 : index
    %15 = vector.load %arg4[%c0_6, %c0_7, %c0_8] : memref<1x8x128xf32, #tpu.memory_space<vmem>>, vector<1x8x128xf32>
    %16 = vector.shape_cast %15 : vector<1x8x128xf32> to vector<8x128xf32>
    %17 = vector.shape_cast %14 : vector<16x128xf32> to vector<2x8x128xf32>
    %cst_9 = arith.constant dense<0.000000e+00> : vector<8x128xf32>
    %18 = vector.multi_reduction <add>, %17, %cst_9 [0] : vector<2x8x128xf32> to vector<8x128xf32>
    %19 = arith.addf %16, %18 : vector<8x128xf32>
    %c0_10 = arith.constant 0 : index
    %c0_11 = arith.constant 0 : index
    %c0_12 = arith.constant 0 : index
    %20 = vector.load %arg4[%c0_10, %c0_11, %c0_12] : memref<1x8x128xf32, #tpu.memory_space<vmem>>, vector<1x8x128xf32>
    %21 = vector.shape_cast %20 : vector<1x8x128xf32> to vector<8x128xf32>
    %22 = vector.shape_cast %19 : vector<8x128xf32> to vector<1x8x128xf32>
    tpu.vector_store %arg4[%c0_10, %c0_11, %c0_12], %22 {strides = array<i32>} : memref<1x8x128xf32, #tpu.memory_space<vmem>>, vector<1x8x128xf32>,
    return
  }
  func.func @transform_0(%arg0: i32, %arg1: i32) -> (i32, i32) {
    %c1_i32 = arith.constant 1 : i32
    %0 = arith.muli %arg0, %c1_i32 : i32
    %1 = arith.addi %0, %arg1 : i32
    %c0_i32 = arith.constant 0 : i32
    %c0_i32_0 = arith.constant 0 : i32
    return %1, %c0_i32 : i32, i32
  }
  func.func @transform_1(%arg0: i32, %arg1: i32) -> (i32, i32) {
    %c1_i32 = arith.constant 1 : i32
    %0 = arith.muli %arg0, %c1_i32 : i32
    %1 = arith.addi %0, %arg1 : i32
    %c0_i32 = arith.constant 0 : i32
    %c0_i32_0 = arith.constant 0 : i32
    return %1, %c0_i32 : i32, i32
  }
  func.func @transform_2(%arg0: i32, %arg1: i32) -> (i32, i32, i32) {
    %c0_i32 = arith.constant 0 : i32
    %c0_i32_0 = arith.constant 0 : i32
    %c0_i32_1 = arith.constant 0 : i32
    return %arg0, %c0_i32, %c0_i32_0 : i32, i32, i32
  }
}

</mosaic_0001>

<llo_original>
// kernel: tpu_custom_call.1
$region0: #{tpu_custom_call.1}
  #allocation0 [shape = 'u32[]', space=smem, size = 0x4, offset = 0x4, fixed_abs, tag = 'smem constant byte address 0x4 - core index']
  #allocation1 [shape = 'u32[144,128]{1,0:T(1,128)}', space=vmem, size = 0x12000, scoped, tag = 'internal scratch']
  %s0 = inlined_call_operand.hbm [shape: f32[16,128], index: 0, kind: input, shape index: {}]
  %s1 = inlined_call_operand.hbm [shape: f32[16,128], index: 1, kind: input, shape index: {}]
  %s2 = inlined_call_operand.hbm [shape: f32[1,8,128], index: 2, kind: output, shape index: {}]
  %s3 = sld [smem:[#allocation0]]
  $region30: #{tpu_custom_call.1} parent=0
    _
  %s5 = ssub.s32 1, %s3
  %s6 = scalar_select 0, %s5, %s3
  $region1: #{tpu_custom_call.1} parent=0
    #allocation2 [shape = 'u8[8192]{0}', space=vmem, size = 0x2000, scoped, tag = 'input window, operand 0, single buffered']
    #allocation3 [shape = 's32[1]{0}', space=sflag, size = 0x4, scoped, tag = 'scoped memory for tpu_custom_call.1']
    #allocation4 [shape = 's32[1]{0}', space=sflag, size = 0x4, scoped, tag = 'scoped memory for tpu_custom_call.1']
    #allocation5 [shape = 'u8[8192]{0}', space=vmem, size = 0x2000, scoped, tag = 'input window, operand 1, single buffered']
    #allocation6 [shape = 's32[1]{0}', space=sflag, size = 0x4, scoped, tag = 'scoped memory for tpu_custom_call.1']
    #allocation7 [shape = 'u8[4096]{0}', space=vmem, size = 0x1000, scoped, tag = 'output window, operand 0, single buffered']
    %7 = vsyncpa [#allocation3], 0
    %8 = vsyncpa [#allocation6], 0
    %9 = vsyncpa [#allocation4], 0
    // Predicated region
    $region2: #{tpu_custom_call.1} parent=1 // pred_check
      _
    $region3: #{tpu_custom_call.1} parent=1 // pred_check_branch
      %11 = sbr.rel (0) target = $region5
    $region4: #{tpu_custom_call.1} parent=1 // pred_region
      %s12 = sadd.s32 0, 0
      %s13 = smul.u32 2, %s12
      %s15 = ssub.s32 256, 256
      %16 = vsyncadd [#allocation3], %s15
      %s17 = smul.addr %s13, 128
      %s18 = scalar_lea.hbm %s0, %s17
      %s19 = sshll.u32 [#allocation2], 4
      %s20 = int_to_ptr.vmem [resolvable:$true] %s19
      %25 = dma.hbm_to_vmem [thread:$0]  %s18, 256, %s20, [#allocation3], 128, 128, 8
    $region5: #{tpu_custom_call.1} parent=1 // pred_fallthru
      _
    // Predicated region
    $region6: #{tpu_custom_call.1} parent=1 // pred_check
      _
    $region7: #{tpu_custom_call.1} parent=1 // pred_check_branch
      %27 = sbr.rel (0) target = $region9
    $region8: #{tpu_custom_call.1} parent=1 // pred_region
      %s28 = sadd.s32 0, 0
      %s29 = smul.u32 2, %s28
      %s31 = ssub.s32 256, 256
      %32 = vsyncadd [#allocation6], %s31
      %s33 = smul.addr %s29, 128
      %s34 = scalar_lea.hbm %s1, %s33
      %s35 = sshll.u32 [#allocation5], 4
      %s36 = int_to_ptr.vmem [resolvable:$true] %s35
      %41 = dma.hbm_to_vmem [thread:$0]  %s34, 256, %s36, [#allocation6], 128, 128, 8
    $region9: #{tpu_custom_call.1} parent=1 // pred_fallthru
      _
    // Predicated region
    $region10: #{tpu_custom_call.1} parent=1 // pred_check
      _
    $region11: #{tpu_custom_call.1} parent=1 // pred_check_branch
      %43 = sbr.rel (0) target = $region13
    $region12: #{tpu_custom_call.1} parent=1 // pred_region
      %44 = dma.done [#allocation3], 256
    $region13: #{tpu_custom_call.1} parent=1 // pred_fallthru
      _
    // Predicated region
    $region14: #{tpu_custom_call.1} parent=1 // pred_check
      _
    $region15: #{tpu_custom_call.1} parent=1 // pred_check_branch
      %46 = sbr.rel (0) target = $region17
    $region16: #{tpu_custom_call.1} parent=1 // pred_region
      %47 = dma.done [#allocation6], 256
    $region17: #{tpu_custom_call.1} parent=1 // pred_fallthru
      _
    %s48 = sadd.s32 0, 0
    %s49 = smul.u32 2, %s48
    %s50 = sadd.s32 0, 0
    %s51 = smul.u32 2, %s50
    %p52 = scmp.eq.s32.totalorder 0, 0
    // Predicated region
    $region18: #{tpu_custom_call.1} parent=1 // pred_check
      %p53 = pneg %p52
    $region19: #{tpu_custom_call.1} parent=1 // pred_check_branch
      %55 = sbr.rel (%p53) target = $region21
    $region20: #{tpu_custom_call.1} parent=1 // pred_region
      %56 = vst [vmem:[#allocation7] sm:$0xff] 0.0
    $region21: #{tpu_custom_call.1} parent=1 // pred_fallthru
      _
    %v57 = vld [vmem:[#allocation2] sm:$0xff]
    %v58 = vld [vmem:[#allocation2 + $0x8] sm:$0xff]
    %v59 = vld [vmem:[#allocation5] sm:$0xff]
    %v60 = vld [vmem:[#allocation5 + $0x8] sm:$0xff]
    %v61 = vsub.f32 %v57, %v59
    %v62 = vsub.f32 %v58, %v60
    %v63 = vand.u32 2147483647, %v61
    %v64 = vand.u32 2147483647, %v62
    %vm65 = vcmp.lt.f32.partialorder %v63, 0.1
    %vm66 = vcmp.lt.f32.partialorder %v64, 0.1
    %v67 = vmul.f32 %v61, %v61
    %v68 = vmul.f32 %v62, %v62
    %v69 = vmul.f32 %v67, 5.0
    %v70 = vmul.f32 %v68, 5.0
    %v71 = vsub.f32 %v63, 0.05
    %v72 = vsub.f32 %v64, 0.05
    %v73 = vsel %vm65, %v69, %v71
    %v74 = vsel %vm66, %v70, %v72
    %v75 = vld [vmem:[#allocation7] sm:$0xff]
    %v76 = vadd.f32 %v73, %v74
    %v77 = vadd.f32 %v75, %v76
    %78 = vst [vmem:[#allocation7] sm:$0xff] %v77
    // Predicated region
    $region22: #{tpu_custom_call.1} parent=1 // pred_check
      _
    $region23: #{tpu_custom_call.1} parent=1 // pred_check_branch
      %80 = sbr.rel (0) target = $region25
    $region24: #{tpu_custom_call.1} parent=1 // pred_region
      %s82 = ssub.s32 128, 128
      %83 = vsyncadd [#allocation4], %s82
      %s85 = sshll.u32 [#allocation7], 4
      %s86 = int_to_ptr.vmem [resolvable:$true] %s85
      %88 = dma.vmem_to_hbm [thread:$0]  %s86, 128, %s2, [#allocation4]
    $region25: #{tpu_custom_call.1} parent=1 // pred_fallthru
      _
    // Predicated region
    $region26: #{tpu_custom_call.1} parent=1 // pred_check
      _
    $region27: #{tpu_custom_call.1} parent=1 // pred_check_branch
      %90 = sbr.rel (0) target = $region29
    $region28: #{tpu_custom_call.1} parent=1 // pred_region
      %91 = dma.done [#allocation4], 128
    $region29: #{tpu_custom_call.1} parent=1 // pred_fallthru
      _
    %92 = vsyncpa [#allocation3], 1
    %93 = vsyncpa [#allocation6], 1
    %94 = vsyncpa [#allocation4], 1

</llo_original>
